<compile_context>
chip_gen: v6e
topology: v6e:2x2x1
jax: 0.10.0
libtpu: 0.0.40
codegen_flags: <defaults>
</compile_context>

<pallas_src>
import jax
import jax.numpy as jnp
from jax import lax
from jax.experimental import pallas as pl
from jax.experimental.pallas import tpu as pltpu

LANE = 128


def _round_up(n, m):
    return (n + m - 1) // m * m


def autoencoder_kernel(inp_ref, lat_ref, eps_ref, mask_ref,
                       w1_ref, b1_ref, w2_ref, b2_ref, out_ref):
    # outp = inp_latent_approx + eps                       (B, LATENT)
    x = lat_ref[...] + eps_ref[...]

    # lin1 + ReLU. Torch Linear weight is (HIDDEN, LATENT); contract the last
    # dims directly on the MXU (rhs-transposed matmul), no wrapper transpose.
    h = lax.dot_general(x, w1_ref[...],
                        dimension_numbers=(((1,), (1,)), ((), ())),
                        preferred_element_type=jnp.float32)
    h = jnp.maximum(h + b1_ref[...], 0.0)                  # (B, HIDDEN)

    # lin2. Weight is lane-padded torch layout (OUT_PAD, HIDDEN).
    y = lax.dot_general(h, w2_ref[...],
                        dimension_numbers=(((1,), (1,)), ((), ())),
                        preferred_element_type=jnp.float32)
    y = y + b2_ref[...]                                    # (B, OUT_PAD)

    # mask * y + (1 - mask) * inp  ==  inp + mask * (y - inp)
    # (padded lanes: mask==0, inp==0, y==0 -> output 0, sliced off by wrapper)
    inp = inp_ref[...]
    out_ref[...] = inp + mask_ref[...] * (y - inp)


def prepare_params(w1, b1, w2, b2, mask):
    """One-time (model-init) parameter layout prep.

    Keeps torch weight layout; lane-pads the output-feature dim to a multiple
    of 128 so the kernel's output store is lane-dense.
    """
    hidden, _latent = w1.shape
    out_dim = w2.shape[0]
    out_p = _round_up(out_dim, LANE)

    b1_2d = b1.reshape(1, hidden)
    w2_p = jnp.zeros((out_p, hidden), w2.dtype).at[:out_dim, :].set(w2)
    b2_p = jnp.zeros((1, out_p), b2.dtype).at[0, :out_dim].set(b2)
    mask_f = jnp.broadcast_to(jnp.asarray(mask, jnp.float32), (out_dim,))
    mask_p = jnp.zeros((1, out_p), jnp.float32).at[0, :out_dim].set(mask_f)
    return w1, b1_2d, w2_p, b2_p, mask_p


def autoencoder_forward(inp, inp_latent_approx, eps,
                        w1, b1_2d, w2_p, b2_p, mask_p, out_dim):
    """inp: any shape with B*out_dim elements; latent/eps: (B, LATENT)."""
    B = inp_latent_approx.shape[0]
    out_p = w2_p.shape[0]

    # Per-call glue: bitcast-reshape inp to (B, out_dim) and zero-pad lanes to
    # out_p (tiny, fused by XLA under jit). Everything else goes in unchanged.
    inp_p = jnp.zeros((B, out_p), jnp.float32).at[:, :out_dim].set(
        inp.reshape(B, out_dim))

    vmem = pl.BlockSpec(memory_space=pltpu.MemorySpace.VMEM)
    out_padded = pl.pallas_call(
        autoencoder_kernel,
        out_shape=jax.ShapeDtypeStruct((B, out_p), jnp.float32),
        in_specs=[vmem] * 8,
        out_specs=vmem,
        input_output_aliases={0: 0},   # inp_p buffer reused as the output
    )(inp_p, inp_latent_approx, eps, mask_p, w1, b1_2d, w2_p, b2_p)

    return out_padded[:, :out_dim]


def torch_linear_init(key, out_features, in_features):
    """Deterministic init mimicking torch.nn.Linear (uniform(-1/sqrt(fan_in)))."""
    kw, kb = jax.random.split(key)
    bound = 1.0 / jnp.sqrt(in_features)
    w = jax.random.uniform(kw, (out_features, in_features), jnp.float32, -bound, bound)
    b = jax.random.uniform(kb, (out_features,), jnp.float32, -bound, bound)
    return w, b


if __name__ == "__main__":
    # Small, module-consistent shapes.
    B = 8
    LATENT = 32
    HIDDEN = LATENT // 2          # 16
    OUT = 64

    key = jax.random.PRNGKey(0)
    k_inp, k_lat, k_eps, k_mask, k_w1, k_w2 = jax.random.split(key, 6)

    # Parameters (shapes from AutoEncoder.__init__), torch layout.
    w1, b1 = torch_linear_init(k_w1, HIDDEN, LATENT)   # lin1: LATENT -> HIDDEN
    w2, b2 = torch_linear_init(k_w2, OUT, HIDDEN)      # lin2: HIDDEN -> OUT

    # Binary mask over output features (broadcasts over batch, like torch).
    mask = (jax.random.uniform(k_mask, (OUT,)) > 0.5).astype(jnp.float32)

    # Inputs: inp has B*OUT elements (module reshapes it to the output shape).
    inp = jax.random.normal(k_inp, (B, 8, 8), jnp.float32)       # 8*8 == OUT
    inp_latent_approx = jax.random.normal(k_lat, (B, LATENT), jnp.float32)
    eps = 0.01 * jax.random.normal(k_eps, (B, LATENT), jnp.float32)

    # One-time parameter layout prep (lane-padding, bias reshape).
    params = prepare_params(w1, b1, w2, b2, mask)

    fwd = jax.jit(autoencoder_forward, static_argnums=(8,))
    out = fwd(inp, inp_latent_approx, eps, *params, OUT)
    out = jax.block_until_ready(out)

    # Pure-JAX reference of the exact module semantics.
    x = inp_latent_approx + eps
    h = jnp.maximum(x @ w1.T + b1, 0.0)
    y = h @ w2.T + b2
    ref = mask[None, :] * y + (1.0 - mask[None, :]) * inp.reshape(B, OUT)
    assert out.shape == (B, OUT)
    assert jnp.allclose(out, ref, atol=1e-5, rtol=1e-5), "mismatch vs reference"

    print("KERNEL_OK")
</pallas_src>

<mosaic_0001>
module attributes {stable_mosaic.version = 11 : i64} {
  func.func @autoencoder_kernel(%arg0: memref<8x128xf32, #tpu.memory_space<vmem>>, %arg1: memref<8x32xf32, #tpu.memory_space<vmem>>, %arg2: memref<8x32xf32, #tpu.memory_space<vmem>>, %arg3: memref<1x128xf32, #tpu.memory_space<vmem>>, %arg4: memref<16x32xf32, #tpu.memory_space<vmem>>, %arg5: memref<1x16xf32, #tpu.memory_space<vmem>>, %arg6: memref<128x16xf32, #tpu.memory_space<vmem>>, %arg7: memref<1x128xf32, #tpu.memory_space<vmem>>, %arg8: memref<8x128xf32, #tpu.memory_space<vmem>>) attributes {dimension_semantics = [], scalar_prefetch = 0 : i64, scratch_operands = 0 : i64, tpu.core_type = #tpu.core_type<tc>} {
    %c0 = arith.constant 0 : index
    %c0_0 = arith.constant 0 : index
    %0 = vector.load %arg1[%c0, %c0_0] : memref<8x32xf32, #tpu.memory_space<vmem>>, vector<8x32xf32>
    %c0_1 = arith.constant 0 : index
    %c0_2 = arith.constant 0 : index
    %1 = vector.load %arg2[%c0_1, %c0_2] : memref<8x32xf32, #tpu.memory_space<vmem>>, vector<8x32xf32>
    %2 = arith.addf %0, %1 : vector<8x32xf32>
    %c0_3 = arith.constant 0 : index
    %c0_4 = arith.constant 0 : index
    %3 = vector.load %arg4[%c0_3, %c0_4] : memref<16x32xf32, #tpu.memory_space<vmem>>, vector<16x32xf32>
    %cst = arith.constant dense<0.000000e+00> : vector<8x16xf32>
    %4 = tpu.matmul %2, %3, %cst {dimension_numbers = #tpu.dot_dimension_numbers<[1], [1], [0], [0], [0, 0, 1, 0], [], []>} : vector<8x32xf32>, vector<16x32xf32>, vector<8x16xf32> -> vector<8x16xf32>
    %c0_5 = arith.constant 0 : index
    %c0_6 = arith.constant 0 : index
    %5 = vector.load %arg5[%c0_5, %c0_6] : memref<1x16xf32, #tpu.memory_space<vmem>>, vector<1x16xf32>
    %6 = vector.broadcast %5 : vector<1x16xf32> to vector<8x16xf32>
    %7 = arith.addf %4, %6 : vector<8x16xf32>
    %cst_7 = arith.constant 0.000000e+00 : f32
    %8 = vector.broadcast %cst_7 : f32 to vector<8x16xf32>
    %9 = arith.maximumf %7, %8 : vector<8x16xf32>
    %c0_8 = arith.constant 0 : index
    %c0_9 = arith.constant 0 : index
    %10 = vector.load %arg6[%c0_8, %c0_9] : memref<128x16xf32, #tpu.memory_space<vmem>>, vector<128x16xf32>
    %cst_10 = arith.constant dense<0.000000e+00> : vector<8x128xf32>
    %11 = tpu.matmul %9, %10, %cst_10 {dimension_numbers = #tpu.dot_dimension_numbers<[1], [1], [0], [0], [0, 0, 1, 0], [], []>} : vector<8x16xf32>, vector<128x16xf32>, vector<8x128xf32> -> vector<8x128xf32>
    %c0_11 = arith.constant 0 : index
    %c0_12 = arith.constant 0 : index
    %12 = vector.load %arg7[%c0_11, %c0_12] : memref<1x128xf32, #tpu.memory_space<vmem>>, vector<1x128xf32>
    %13 = vector.broadcast %12 : vector<1x128xf32> to vector<8x128xf32>
    %14 = arith.addf %11, %13 : vector<8x128xf32>
    %c0_13 = arith.constant 0 : index
    %c0_14 = arith.constant 0 : index
    %15 = vector.load %arg0[%c0_13, %c0_14] : memref<8x128xf32, #tpu.memory_space<vmem>>, vector<8x128xf32>
    %c0_15 = arith.constant 0 : index
    %c0_16 = arith.constant 0 : index
    %16 = vector.load %arg3[%c0_15, %c0_16] : memref<1x128xf32, #tpu.memory_space<vmem>>, vector<1x128xf32>
    %17 = arith.subf %14, %15 : vector<8x128xf32>
    %18 = vector.broadcast %16 : vector<1x128xf32> to vector<8x128xf32>
    %19 = arith.mulf %18, %17 : vector<8x128xf32>
    %20 = arith.addf %15, %19 : vector<8x128xf32>
    %c0_17 = arith.constant 0 : index
    %c0_18 = arith.constant 0 : index
    %21 = vector.load %arg8[%c0_17, %c0_18] : memref<8x128xf32, #tpu.memory_space<vmem>>, vector<8x128xf32>
    tpu.vector_store %arg8[%c0_17, %c0_18], %20 {strides = array<i32>} : memref<8x128xf32, #tpu.memory_space<vmem>>, vector<8x128xf32>,
    return
  }
}

</mosaic_0001>

<llo_original>
// kernel: autoencoder_forward.1
$region0: #{autoencoder_forward.1}
  #allocation0 [shape = 'u32[]', space=smem, size = 0x4, offset = 0x4, fixed_abs, tag = 'smem constant byte address 0x4 - core index']
  #allocation1 [shape = 'u32[144,128]{1,0:T(1,128)}', space=vmem, size = 0x12000, scoped, tag = 'internal scratch']
  %s0 = inlined_call_operand.vmem [shape: f32[8,128], index: 0, kind: input, shape index: {}, may-alias: {0,8}]
  %s1 = inlined_call_operand.vmem [shape: f32[8,32], index: 1, kind: input, shape index: {}]
  %s2 = inlined_call_operand.vmem [shape: f32[8,32], index: 2, kind: input, shape index: {}]
  %s3 = inlined_call_operand.vmem [shape: f32[1,128], index: 3, kind: input, shape index: {}]
  %s4 = inlined_call_operand.vmem [shape: f32[16,32], index: 4, kind: input, shape index: {}]
  %s5 = inlined_call_operand.vmem [shape: f32[1,16], index: 5, kind: input, shape index: {}]
  %s6 = inlined_call_operand.vmem [shape: f32[128,16], index: 6, kind: input, shape index: {}]
  %s7 = inlined_call_operand.vmem [shape: f32[1,128], index: 7, kind: input, shape index: {}]
  %s8 = inlined_call_operand.vmem [shape: f32[8,128], index: 8, kind: output, shape index: {}, may-alias: {0,8}]
  %s9 = sld [smem:[#allocation0]]
  $region42: #{autoencoder_forward.1} parent=0
    _
  %s11 = ssub.s32 1, %s9
  %s12 = scalar_select 0, %s11, %s9
  // Predicated region
  $region2: #{autoencoder_forward.1} parent=0 // pred_check
    _
  $region3: #{autoencoder_forward.1} parent=0 // pred_check_branch
    %14 = sbr.rel (0) target = $region5
  $region4: #{autoencoder_forward.1} parent=0 // pred_region
    _
  $region5: #{autoencoder_forward.1} parent=0 // pred_fallthru
    _
  // Predicated region
  $region6: #{autoencoder_forward.1} parent=0 // pred_check
    _
  $region7: #{autoencoder_forward.1} parent=0 // pred_check_branch
    %16 = sbr.rel (0) target = $region9
  $region8: #{autoencoder_forward.1} parent=0 // pred_region
    _
  $region9: #{autoencoder_forward.1} parent=0 // pred_fallthru
    _
  // Predicated region
  $region10: #{autoencoder_forward.1} parent=0 // pred_check
    _
  $region11: #{autoencoder_forward.1} parent=0 // pred_check_branch
    %18 = sbr.rel (0) target = $region13
  $region12: #{autoencoder_forward.1} parent=0 // pred_region
    _
  $region13: #{autoencoder_forward.1} parent=0 // pred_fallthru
    _
  // Predicated region
  $region14: #{autoencoder_forward.1} parent=0 // pred_check
    _
  $region15: #{autoencoder_forward.1} parent=0 // pred_check_branch
    %20 = sbr.rel (0) target = $region17
  $region16: #{autoencoder_forward.1} parent=0 // pred_region
    _
  $region17: #{autoencoder_forward.1} parent=0 // pred_fallthru
    _
  // Predicated region
  $region18: #{autoencoder_forward.1} parent=0 // pred_check
    _
  $region19: #{autoencoder_forward.1} parent=0 // pred_check_branch
    %22 = sbr.rel (0) target = $region21
  $region20: #{autoencoder_forward.1} parent=0 // pred_region
    _
  $region21: #{autoencoder_forward.1} parent=0 // pred_fallthru
    _
  // Predicated region
  $region22: #{autoencoder_forward.1} parent=0 // pred_check
    _
  $region23: #{autoencoder_forward.1} parent=0 // pred_check_branch
    %24 = sbr.rel (0) target = $region25
  $region24: #{autoencoder_forward.1} parent=0 // pred_region
    _
  $region25: #{autoencoder_forward.1} parent=0 // pred_fallthru
    _
  // Predicated region
  $region26: #{autoencoder_forward.1} parent=0 // pred_check
    _
  $region27: #{autoencoder_forward.1} parent=0 // pred_check_branch
    %26 = sbr.rel (0) target = $region29
  $region28: #{autoencoder_forward.1} parent=0 // pred_region
    _
  $region29: #{autoencoder_forward.1} parent=0 // pred_fallthru
    _
  // Predicated region
  $region30: #{autoencoder_forward.1} parent=0 // pred_check
    _
  $region31: #{autoencoder_forward.1} parent=0 // pred_check_branch
    %28 = sbr.rel (0) target = $region33
  $region32: #{autoencoder_forward.1} parent=0 // pred_region
    _
  $region33: #{autoencoder_forward.1} parent=0 // pred_fallthru
    _
  %v29 = vld [vmem:[%s1] sm:$0xff]
  %v30 = vld [vmem:[%s2] sm:$0xff]
  %v31 = vadd.f32 %v29, %v30
  %v32 = vld [vmem:[%s4] sm:$0xff]
  %v33 = vld [vmem:[%s4 + $0x8] sm:$0xff]
  %v34 = vld [vmem:[%s5] sm:$0x1]
  %v36 = vlaneseq
  %v37 = vshrl.u32 %v36, 7
  %v38 = vsub.s32 0, %v37
  %v39 = vrot.slane %v34, %v38
  %vm41 = vcmask 261120
  %v43 = vsel %vm41, %v31, 0
  %v46 = vsel %vm41, %v32, 0
  %v49 = vsel %vm41, %v33, 0
  %51 = vmatprep.subr.mxu0 0.0
  %52 = vmatpush1.xpose.msra.mxu0 0.0
  %53 = vmatprep.subr.mxu0 0.0
  %54 = vmatpush1.xpose.msra.mxu0 0.0
  %55 = vmatprep.subr.mxu0 0.0
  %56 = vmatpush1.xpose.msra.mxu0 0.0
  %57 = vmatprep.subr.mxu0 0.0
  %58 = vmatpush1.xpose.msra.mxu0 0.0
  %59 = vmatprep.subr.mxu0 0.0
  %60 = vmatpush1.xpose.msra.mxu0 0.0
  %61 = vmatprep.subr.mxu0 0.0
  %62 = vmatpush1.xpose.msra.mxu0 0.0
  %63 = vmatprep.subr.mxu0 0.0
  %64 = vmatpush1.xpose.msra.mxu0 0.0
  %65 = vmatprep.subr.mxu0 0.0
  %66 = vmatpush1.xpose.msra.mxu0 0.0
  %67 = vmatprep.subr.mxu0 0.0
  %68 = vmatpush1.xpose.msra.mxu0 0.0
  %69 = vmatprep.subr.mxu0 0.0
  %70 = vmatpush1.xpose.msra.mxu0 0.0
  %71 = vmatprep.subr.mxu0 0.0
  %72 = vmatpush1.xpose.msra.mxu0 0.0
  %73 = vmatprep.subr.mxu0 0.0
  %74 = vmatpush1.xpose.msra.mxu0 0.0
  %75 = vmatprep.subr.mxu0 0.0
  %76 = vmatpush1.xpose.msra.mxu0 0.0
  %77 = vmatprep.subr.mxu0 0.0
  %78 = vmatpush1.xpose.msra.mxu0 0.0
  %79 = vmatprep.subr.mxu0 0.0
  %80 = vmatpush1.xpose.msra.mxu0 %v49
  %81 = vmatprep.subr.mxu0 0.0
  %82 = vmatpush1.xpose.msra.mxu0 %v46
  %83 = vmatprep.subr.mxu0 0.0
  %84 = vmatpush2.xpose.msra.mxu0 0.0
  %85 = vmatprep.subr.mxu0 0.0
  %86 = vmatpush2.xpose.msra.mxu0 0.0
  %87 = vmatprep.subr.mxu0 0.0
  %88 = vmatpush2.xpose.msra.mxu0 0.0
  %89 = vmatprep.subr.mxu0 0.0
  %90 = vmatpush2.xpose.msra.mxu0 0.0
  %91 = vmatprep.subr.mxu0 0.0
  %92 = vmatpush2.xpose.msra.mxu0 0.0
  %93 = vmatprep.subr.mxu0 0.0
  %94 = vmatpush2.xpose.msra.mxu0 0.0
  %95 = vmatprep.subr.mxu0 0.0
  %96 = vmatpush2.xpose.msra.mxu0 0.0
  %97 = vmatprep.subr.mxu0 0.0
  %98 = vmatpush2.xpose.msra.mxu0 0.0
  %99 = vmatprep.subr.mxu0 0.0
  %100 = vmatpush2.xpose.msra.mxu0 0.0
  %101 = vmatprep.subr.mxu0 0.0
  %102 = vmatpush2.xpose.msra.mxu0 0.0
  %103 = vmatprep.subr.mxu0 0.0
  %104 = vmatpush2.xpose.msra.mxu0 0.0
  %105 = vmatprep.subr.mxu0 0.0
  %106 = vmatpush2.xpose.msra.mxu0 0.0
  %107 = vmatprep.subr.mxu0 0.0
  %108 = vmatpush2.xpose.msra.mxu0 0.0
  %109 = vmatprep.subr.mxu0 0.0
  %110 = vmatpush2.xpose.msra.mxu0 0.0
  %111 = vmatprep.subr.mxu0 0.0
  %112 = vmatpush2.xpose.msra.mxu0 0.0
  %113 = vmatprep.subr.mxu0 0.0
  %114 = vmatpush2.xpose.msra.mxu0 0.0
  %115 = vmatprep.mubr.f32.mxu0 0.0
  %116 = vmatmul.mubr.f32.gmra.mxu0 %v43
  %v117 = vpop.f32.mrf.mxu0
  %v118 = vadd.f32 %v39, %v117
  %v119 = vpop.f32.mrf.mxu0
  %120 = vdwg.mxu0
  %v121 = vmax.f32 %v118, 0.0
  %v122 = vld [vmem:[%s6] sm:$0xff]
  %v123 = vld [vmem:[%s6 + $0x8] sm:$0xff]
  %v124 = vld [vmem:[%s6 + $0x10] sm:$0xff]
  %v125 = vld [vmem:[%s6 + $0x18] sm:$0xff]
  %v126 = vld [vmem:[%s6 + $0x20] sm:$0xff]
  %v127 = vld [vmem:[%s6 + $0x28] sm:$0xff]
  %v128 = vld [vmem:[%s6 + $0x30] sm:$0xff]
  %v129 = vld [vmem:[%s6 + $0x38] sm:$0xff]
  %v130 = vld [vmem:[%s6 + $0x40] sm:$0xff]
  %v131 = vld [vmem:[%s6 + $0x48] sm:$0xff]
  %v132 = vld [vmem:[%s6 + $0x50] sm:$0xff]
  %v133 = vld [vmem:[%s6 + $0x58] sm:$0xff]
  %v134 = vld [vmem:[%s6 + $0x60] sm:$0xff]
  %v135 = vld [vmem:[%s6 + $0x68] sm:$0xff]
  %v136 = vld [vmem:[%s6 + $0x70] sm:$0xff]
  %v137 = vld [vmem:[%s6 + $0x78] sm:$0xff]
  %v138 = vld [vmem:[%s7] sm:$0x1]
  %v140 = vlaneseq
  %v141 = vshrl.u32 %v140, 7
  %v142 = vsub.s32 0, %v141
  %v143 = vrot.slane %v138, %v142
  %vm145 = vcmask 130048
  %v147 = vsel %vm145, %v121, 0
  %v150 = vsel %vm145, %v122, 0
  %v153 = vsel %vm145, %v123, 0
  %v156 = vsel %vm145, %v124, 0
  %v159 = vsel %vm145, %v125, 0
  %v162 = vsel %vm145, %v126, 0
  %v165 = vsel %vm145, %v127, 0
  %v168 = vsel %vm145, %v128, 0
  %v171 = vsel %vm145, %v129, 0
  %v174 = vsel %vm145, %v130, 0
  %v177 = vsel %vm145, %v131, 0
  %v180 = vsel %vm145, %v132, 0
  %v183 = vsel %vm145, %v133, 0
  %v186 = vsel %vm145, %v134, 0
  %v189 = vsel %vm145, %v135, 0
  %v192 = vsel %vm145, %v136, 0
  %v195 = vsel %vm145, %v137, 0
  %197 = vmatprep.subr.mxu0 0.0
  %198 = vmatpush1.xpose.msra.mxu0 %v195
  %199 = vmatprep.subr.mxu0 0.0
  %200 = vmatpush1.xpose.msra.mxu0 %v192
  %201 = vmatprep.subr.mxu0 0.0
  %202 = vmatpush1.xpose.msra.mxu0 %v189
  %203 = vmatprep.subr.mxu0 0.0
  %204 = vmatpush1.xpose.msra.mxu0 %v186
  %205 = vmatprep.subr.mxu0 0.0
  %206 = vmatpush1.xpose.msra.mxu0 %v183
  %207 = vmatprep.subr.mxu0 0.0
  %208 = vmatpush1.xpose.msra.mxu0 %v180
  %209 = vmatprep.subr.mxu0 0.0
  %210 = vmatpush1.xpose.msra.mxu0 %v177
  %211 = vmatprep.subr.mxu0 0.0
  %212 = vmatpush1.xpose.msra.mxu0 %v174
  %213 = vmatprep.subr.mxu0 0.0
  %214 = vmatpush1.xpose.msra.mxu0 %v171
  %215 = vmatprep.subr.mxu0 0.0
  %216 = vmatpush1.xpose.msra.mxu0 %v168
  %217 = vmatprep.subr.mxu0 0.0
  %218 = vmatpush1.xpose.msra.mxu0 %v165
  %219 = vmatprep.subr.mxu0 0.0
  %220 = vmatpush1.xpose.msra.mxu0 %v162
  %221 = vmatprep.subr.mxu0 0.0
  %222 = vmatpush1.xpose.msra.mxu0 %v159
  %223 = vmatprep.subr.mxu0 0.0
  %224 = vmatpush1.xpose.msra.mxu0 %v156
  %225 = vmatprep.subr.mxu0 0.0
  %226 = vmatpush1.xpose.msra.mxu0 %v153
  %227 = vmatprep.subr.mxu0 0.0
  %228 = vmatpush1.xpose.msra.mxu0 %v150
  %229 = vmatprep.subr.mxu0 0.0
  %230 = vmatpush2.xpose.msra.mxu0 0.0
  %231 = vmatprep.subr.mxu0 0.0
  %232 = vmatpush2.xpose.msra.mxu0 0.0
  %233 = vmatprep.subr.mxu0 0.0
  %234 = vmatpush2.xpose.msra.mxu0 0.0
  %235 = vmatprep.subr.mxu0 0.0
  %236 = vmatpush2.xpose.msra.mxu0 0.0
  %237 = vmatprep.subr.mxu0 0.0
  %238 = vmatpush2.xpose.msra.mxu0 0.0
  %239 = vmatprep.subr.mxu0 0.0
  %240 = vmatpush2.xpose.msra.mxu0 0.0
  %241 = vmatprep.subr.mxu0 0.0
  %242 = vmatpush2.xpose.msra.mxu0 0.0
  %243 = vmatprep.subr.mxu0 0.0
  %244 = vmatpush2.xpose.msra.mxu0 0.0
  %245 = vmatprep.subr.mxu0 0.0
  %246 = vmatpush2.xpose.msra.mxu0 0.0
  %247 = vmatprep.subr.mxu0 0.0
  %248 = vmatpush2.xpose.msra.mxu0 0.0
  %249 = vmatprep.subr.mxu0 0.0
  %250 = vmatpush2.xpose.msra.mxu0 0.0
  %251 = vmatprep.subr.mxu0 0.0
  %252 = vmatpush2.xpose.msra.mxu0 0.0
  %253 = vmatprep.subr.mxu0 0.0
  %254 = vmatpush2.xpose.msra.mxu0 0.0
  %255 = vmatprep.subr.mxu0 0.0
  %256 = vmatpush2.xpose.msra.mxu0 0.0
  %257 = vmatprep.subr.mxu0 0.0
  %258 = vmatpush2.xpose.msra.mxu0 0.0
  %259 = vmatprep.subr.mxu0 0.0
  %260 = vmatpush2.xpose.msra.mxu0 0.0
  %261 = vmatprep.mubr.f32.mxu0 0.0
  %262 = vmatmul.mubr.f32.gmra.mxu0 %v147
  %v263 = vpop.f32.mrf.mxu0
  %v264 = vadd.f32 %v143, %v263
  %v265 = vpop.f32.mrf.mxu0
  %266 = vdwg.mxu0
  %v267 = vld [vmem:[%s0] sm:$0xff]
  %v268 = vld [vmem:[%s3] sm:$0x1]
  %v269 = vsub.f32 %v264, %v267
  %v271 = vlaneseq
  %v272 = vshrl.u32 %v271, 7
  %v273 = vsub.s32 0, %v272
  %v274 = vrot.slane %v268, %v273
  %v276 = vmul.f32 %v274, %v269
  %v277 = vadd.f32 %v267, %v276
  %278 = vst [vmem:[%s8] sm:$0xff] %v277
  // Predicated region
  $region34: #{autoencoder_forward.1} parent=0 // pred_check
    _
  $region35: #{autoencoder_forward.1} parent=0 // pred_check_branch
    %280 = sbr.rel (0) target = $region37
  $region36: #{autoencoder_forward.1} parent=0 // pred_region
    _
  $region37: #{autoencoder_forward.1} parent=0 // pred_fallthru
    _
  // Predicated region
  $region38: #{autoencoder_forward.1} parent=0 // pred_check
    _
  $region39: #{autoencoder_forward.1} parent=0 // pred_check_branch
    %282 = sbr.rel (0) target = $region41
  $region40: #{autoencoder_forward.1} parent=0 // pred_region
    _
  $region41: #{autoencoder_forward.1} parent=0 // pred_fallthru
    _

</llo_original>
